<compile_context>
chip_gen: v5e
topology: v5e:2x2
jax: 0.10.0
libtpu: 0.0.40
codegen_flags: <defaults>
</compile_context>

<pallas_src>
import functools

import jax
import jax.numpy as jnp
from jax import lax
from jax.experimental import pallas as pl
from jax.experimental.pallas import tpu as pltpu

BN_EPS = 1e-5
CROP_L = 4
CROP_SZ = 7


def _adjust_kernel(x_ref, w_ref, gb_ref, o_ref, *, n, cin, cout, h, w, crop):
    # x_ref:  (N, Cin, HW)     VMEM f32   lane axis = H*W (lane-dense)
    # w_ref:  (Cin, Cout, 1)   VMEM f32   1x1 conv weight as per-Cin columns
    # gb_ref: (2, Cout, 1)     VMEM f32   row 0 = gamma, row 1 = beta
    # o_ref:  (N, Cout, 49)    VMEM f32   if crop else (N, Cout, HW)
    hw = h * w
    inv_count = 1.0 / float(n * hw)

    # ---- 1x1 conv, vectorized over output channels -------------------------
    # (Cout, HW) slab per batch element: sum_c  w[:, c] (Cout,1) * x[c, :] (1, HW)
    ys = []
    for i in range(n):
        xi = x_ref[i]                                    # (Cin, HW)
        acc = w_ref[0] * xi[0:1, :]                      # (Cout, HW)
        for c in range(1, cin):
            acc = acc + w_ref[c] * xi[c:c + 1, :]
        ys.append(acc)

    # ---- BatchNorm2d batch statistics (training-mode forward) --------------
    sum_col = jnp.sum(ys[0], axis=-1, keepdims=True)     # (Cout, 1)
    for i in range(1, n):
        sum_col = sum_col + jnp.sum(ys[i], axis=-1, keepdims=True)
    mean_col = sum_col * inv_count

    cents = [y - mean_col for y in ys]
    sq_col = jnp.sum(cents[0] * cents[0], axis=-1, keepdims=True)
    for i in range(1, n):
        sq_col = sq_col + jnp.sum(cents[i] * cents[i], axis=-1, keepdims=True)
    var_col = sq_col * inv_count                         # biased variance

    scale_col = gb_ref[0] * lax.rsqrt(var_col + BN_EPS)  # gamma folded, (Cout,1)
    beta_col = gb_ref[1]                                 # (Cout, 1)

    if crop:
        # One-hot (HW, 49) selection matrix built from iotas (avoids int div
        # and gathers); applied on the idle MXU. Column j = hh*7 + ww selects
        # flat source index (hh+4)*W + (ww+4), matching x[:, :, 4:11, 4:11].
        nsel = CROP_SZ * CROP_SZ
        j = lax.broadcasted_iota(jnp.int32, (1, nsel), 1)
        hh = (j >= CROP_SZ).astype(jnp.int32)            # hh = j // 7 via compares
        for a in range(2, CROP_SZ):
            hh = hh + (j >= a * CROP_SZ).astype(jnp.int32)
        ww = j - CROP_SZ * hh                            # ww = j % 7
        tgt = (hh + CROP_L) * w + (ww + CROP_L)          # (1, 49) flat source index
        k = lax.broadcasted_iota(jnp.int32, (hw, nsel), 0)
        sel = (k == tgt).astype(jnp.float32)             # (HW, 49)
        for i in range(n):
            cropped = jnp.dot(cents[i], sel, preferred_element_type=jnp.float32)
            o_ref[i] = (cropped * scale_col + beta_col).astype(o_ref.dtype)
    else:
        for i in range(n):
            o_ref[i] = (cents[i] * scale_col + beta_col).astype(o_ref.dtype)


def adjust_layer(x_nchw, w, gamma, beta):
    """Forward pass of AdjustLayer.

    x_nchw: (N, Cin, H, W) f32
    w:      (Cout, Cin)    f32  (1x1 conv weight, squeezed from (Cout,Cin,1,1))
    gamma:  (Cout,)        f32  (BN weight)
    beta:   (Cout,)        f32  (BN bias)
    returns (N, Cout, 7, 7) if W < 20 else (N, Cout, H, W), NCHW.
    """
    n, cin, h, ww = x_nchw.shape
    cout = w.shape[0]
    hw = h * ww
    crop = ww < 20

    # Pure reshape of NCHW — no transpose; last axis (H*W) stays lane-dense.
    x_r = x_nchw.reshape(n, cin, hw)
    # Tiny one-time parameter repacks (could be hoisted by the caller).
    w_cols = jnp.transpose(w).reshape(cin, cout, 1)          # (Cin, Cout, 1)
    gb = jnp.stack([gamma, beta], axis=0).reshape(2, cout, 1)  # (2, Cout, 1)

    out_w = CROP_SZ * CROP_SZ if crop else hw
    kernel = functools.partial(
        _adjust_kernel, n=n, cin=cin, cout=cout, h=h, w=ww, crop=crop)

    out_flat = pl.pallas_call(
        kernel,
        out_shape=jax.ShapeDtypeStruct((n, cout, out_w), jnp.float32),
        in_specs=[
            pl.BlockSpec(memory_space=pltpu.MemorySpace.VMEM),  # x (N, Cin, HW)
            pl.BlockSpec(memory_space=pltpu.MemorySpace.VMEM),  # weight columns
            pl.BlockSpec(memory_space=pltpu.MemorySpace.VMEM),  # gamma/beta columns
        ],
        out_specs=pl.BlockSpec(memory_space=pltpu.MemorySpace.VMEM),
    )(x_r, w_cols, gb)

    if crop:
        # Memory-order-preserving reshape (effectively a bitcast).
        return out_flat.reshape(n, cout, CROP_SZ, CROP_SZ)
    return out_flat.reshape(n, cout, h, ww)


if __name__ == "__main__":
    # batch=2, in_channels=4, out_channels=8, spatial=16 (< 20 => crop branch).
    N, CIN, COUT, H, W = 2, 4, 8, 16, 16

    key = jax.random.PRNGKey(0)
    kx, kw, kg, kb = jax.random.split(key, 4)
    x = jax.random.normal(kx, (N, CIN, H, W), dtype=jnp.float32)
    w = 0.1 * jax.random.normal(kw, (COUT, CIN), dtype=jnp.float32)        # Conv2d 1x1 weight
    gamma = 1.0 + 0.1 * jax.random.normal(kg, (COUT,), dtype=jnp.float32)  # BN weight
    beta = 0.1 * jax.random.normal(kb, (COUT,), dtype=jnp.float32)         # BN bias

    out = adjust_layer(x, w, gamma, beta)
    out = jax.block_until_ready(out)

    # Pure-JAX reference of the PyTorch forward (training-mode BN + crop).
    y = jnp.einsum('oc,nchw->nohw', w, x)
    mean = y.mean(axis=(0, 2, 3), keepdims=True)
    var = jnp.mean((y - mean) ** 2, axis=(0, 2, 3), keepdims=True)
    ref = (y - mean) * lax.rsqrt(var + BN_EPS) * gamma.reshape(1, -1, 1, 1) \
        + beta.reshape(1, -1, 1, 1)
    if W < 20:
        ref = ref[:, :, CROP_L:CROP_L + CROP_SZ, CROP_L:CROP_L + CROP_SZ]

    assert out.shape == ref.shape, (out.shape, ref.shape)
    assert bool(jnp.all(jnp.isfinite(out)))
    assert bool(jnp.allclose(out, ref, atol=1e-3, rtol=1e-3)), \
        float(jnp.max(jnp.abs(out - ref)))
    print("KERNEL_OK")
</pallas_src>

<mosaic_0001>
module attributes {stable_mosaic.version = 11 : i64} {
  func.func @_adjust_kernel(%arg0: memref<2x4x256xf32, #tpu.memory_space<vmem>>, %arg1: memref<4x8x1xf32, #tpu.memory_space<vmem>>, %arg2: memref<2x8x1xf32, #tpu.memory_space<vmem>>, %arg3: memref<2x8x49xf32, #tpu.memory_space<vmem>>) attributes {dimension_semantics = [], scalar_prefetch = 0 : i64, scratch_operands = 0 : i64, tpu.core_type = #tpu.core_type<tc>} {
    %c0 = arith.constant 0 : index
    %c0_0 = arith.constant 0 : index
    %c0_1 = arith.constant 0 : index
    %0 = vector.load %arg0[%c0, %c0_0, %c0_1] : memref<2x4x256xf32, #tpu.memory_space<vmem>>, vector<1x4x256xf32>
    %1 = vector.shape_cast %0 : vector<1x4x256xf32> to vector<4x256xf32>
    %c0_2 = arith.constant 0 : index
    %c0_3 = arith.constant 0 : index
    %c0_4 = arith.constant 0 : index
    %2 = vector.load %arg1[%c0_2, %c0_3, %c0_4] : memref<4x8x1xf32, #tpu.memory_space<vmem>>, vector<1x8x1xf32>
    %3 = vector.shape_cast %2 : vector<1x8x1xf32> to vector<8x1xf32>
    %4 = vector.extract_strided_slice %1 {offsets = [0, 0], sizes = [1, 256], strides = [1, 1]} : vector<4x256xf32> to vector<1x256xf32>
    %5 = vector.broadcast %3 : vector<8x1xf32> to vector<8x256xf32>
    %6 = vector.broadcast %4 : vector<1x256xf32> to vector<8x256xf32>
    %7 = arith.mulf %5, %6 : vector<8x256xf32>
    %c1 = arith.constant 1 : index
    %c0_5 = arith.constant 0 : index
    %c0_6 = arith.constant 0 : index
    %8 = vector.load %arg1[%c1, %c0_5, %c0_6] : memref<4x8x1xf32, #tpu.memory_space<vmem>>, vector<1x8x1xf32>
    %9 = vector.shape_cast %8 : vector<1x8x1xf32> to vector<8x1xf32>
    %10 = vector.extract_strided_slice %1 {offsets = [1, 0], sizes = [1, 256], strides = [1, 1]} : vector<4x256xf32> to vector<1x256xf32>
    %11 = vector.broadcast %9 : vector<8x1xf32> to vector<8x256xf32>
    %12 = vector.broadcast %10 : vector<1x256xf32> to vector<8x256xf32>
    %13 = arith.mulf %11, %12 : vector<8x256xf32>
    %14 = arith.addf %7, %13 : vector<8x256xf32>
    %c2 = arith.constant 2 : index
    %c0_7 = arith.constant 0 : index
    %c0_8 = arith.constant 0 : index
    %15 = vector.load %arg1[%c2, %c0_7, %c0_8] : memref<4x8x1xf32, #tpu.memory_space<vmem>>, vector<1x8x1xf32>
    %16 = vector.shape_cast %15 : vector<1x8x1xf32> to vector<8x1xf32>
    %17 = vector.extract_strided_slice %1 {offsets = [2, 0], sizes = [1, 256], strides = [1, 1]} : vector<4x256xf32> to vector<1x256xf32>
    %18 = vector.broadcast %16 : vector<8x1xf32> to vector<8x256xf32>
    %19 = vector.broadcast %17 : vector<1x256xf32> to vector<8x256xf32>
    %20 = arith.mulf %18, %19 : vector<8x256xf32>
    %21 = arith.addf %14, %20 : vector<8x256xf32>
    %c3 = arith.constant 3 : index
    %c0_9 = arith.constant 0 : index
    %c0_10 = arith.constant 0 : index
    %22 = vector.load %arg1[%c3, %c0_9, %c0_10] : memref<4x8x1xf32, #tpu.memory_space<vmem>>, vector<1x8x1xf32>
    %23 = vector.shape_cast %22 : vector<1x8x1xf32> to vector<8x1xf32>
    %24 = vector.extract_strided_slice %1 {offsets = [3, 0], sizes = [1, 256], strides = [1, 1]} : vector<4x256xf32> to vector<1x256xf32>
    %25 = vector.broadcast %23 : vector<8x1xf32> to vector<8x256xf32>
    %26 = vector.broadcast %24 : vector<1x256xf32> to vector<8x256xf32>
    %27 = arith.mulf %25, %26 : vector<8x256xf32>
    %28 = arith.addf %21, %27 : vector<8x256xf32>
    %c1_11 = arith.constant 1 : index
    %c0_12 = arith.constant 0 : index
    %c0_13 = arith.constant 0 : index
    %29 = vector.load %arg0[%c1_11, %c0_12, %c0_13] : memref<2x4x256xf32, #tpu.memory_space<vmem>>, vector<1x4x256xf32>
    %30 = vector.shape_cast %29 : vector<1x4x256xf32> to vector<4x256xf32>
    %c0_14 = arith.constant 0 : index
    %c0_15 = arith.constant 0 : index
    %c0_16 = arith.constant 0 : index
    %31 = vector.load %arg1[%c0_14, %c0_15, %c0_16] : memref<4x8x1xf32, #tpu.memory_space<vmem>>, vector<1x8x1xf32>
    %32 = vector.shape_cast %31 : vector<1x8x1xf32> to vector<8x1xf32>
    %33 = vector.extract_strided_slice %30 {offsets = [0, 0], sizes = [1, 256], strides = [1, 1]} : vector<4x256xf32> to vector<1x256xf32>
    %34 = vector.broadcast %32 : vector<8x1xf32> to vector<8x256xf32>
    %35 = vector.broadcast %33 : vector<1x256xf32> to vector<8x256xf32>
    %36 = arith.mulf %34, %35 : vector<8x256xf32>
    %c1_17 = arith.constant 1 : index
    %c0_18 = arith.constant 0 : index
    %c0_19 = arith.constant 0 : index
    %37 = vector.load %arg1[%c1_17, %c0_18, %c0_19] : memref<4x8x1xf32, #tpu.memory_space<vmem>>, vector<1x8x1xf32>
    %38 = vector.shape_cast %37 : vector<1x8x1xf32> to vector<8x1xf32>
    %39 = vector.extract_strided_slice %30 {offsets = [1, 0], sizes = [1, 256], strides = [1, 1]} : vector<4x256xf32> to vector<1x256xf32>
    %40 = vector.broadcast %38 : vector<8x1xf32> to vector<8x256xf32>
    %41 = vector.broadcast %39 : vector<1x256xf32> to vector<8x256xf32>
    %42 = arith.mulf %40, %41 : vector<8x256xf32>
    %43 = arith.addf %36, %42 : vector<8x256xf32>
    %c2_20 = arith.constant 2 : index
    %c0_21 = arith.constant 0 : index
    %c0_22 = arith.constant 0 : index
    %44 = vector.load %arg1[%c2_20, %c0_21, %c0_22] : memref<4x8x1xf32, #tpu.memory_space<vmem>>, vector<1x8x1xf32>
    %45 = vector.shape_cast %44 : vector<1x8x1xf32> to vector<8x1xf32>
    %46 = vector.extract_strided_slice %30 {offsets = [2, 0], sizes = [1, 256], strides = [1, 1]} : vector<4x256xf32> to vector<1x256xf32>
    %47 = vector.broadcast %45 : vector<8x1xf32> to vector<8x256xf32>
    %48 = vector.broadcast %46 : vector<1x256xf32> to vector<8x256xf32>
    %49 = arith.mulf %47, %48 : vector<8x256xf32>
    %50 = arith.addf %43, %49 : vector<8x256xf32>
    %c3_23 = arith.constant 3 : index
    %c0_24 = arith.constant 0 : index
    %c0_25 = arith.constant 0 : index
    %51 = vector.load %arg1[%c3_23, %c0_24, %c0_25] : memref<4x8x1xf32, #tpu.memory_space<vmem>>, vector<1x8x1xf32>
    %52 = vector.shape_cast %51 : vector<1x8x1xf32> to vector<8x1xf32>
    %53 = vector.extract_strided_slice %30 {offsets = [3, 0], sizes = [1, 256], strides = [1, 1]} : vector<4x256xf32> to vector<1x256xf32>
    %54 = vector.broadcast %52 : vector<8x1xf32> to vector<8x256xf32>
    %55 = vector.broadcast %53 : vector<1x256xf32> to vector<8x256xf32>
    %56 = arith.mulf %54, %55 : vector<8x256xf32>
    %57 = arith.addf %50, %56 : vector<8x256xf32>
    %cst = arith.constant dense<0.000000e+00> : vector<8xf32>
    %58 = vector.multi_reduction <add>, %28, %cst [1] : vector<8x256xf32> to vector<8xf32>
    %59 = vector.shape_cast %58 : vector<8xf32> to vector<8x1xf32>
    %cst_26 = arith.constant dense<0.000000e+00> : vector<8xf32>
    %60 = vector.multi_reduction <add>, %57, %cst_26 [1] : vector<8x256xf32> to vector<8xf32>
    %61 = vector.shape_cast %60 : vector<8xf32> to vector<8x1xf32>
    %62 = arith.addf %59, %61 : vector<8x1xf32>
    %cst_27 = arith.constant 0.001953125 : f32
    %63 = vector.broadcast %cst_27 : f32 to vector<8x1xf32>
    %64 = arith.mulf %62, %63 : vector<8x1xf32>
    %65 = vector.broadcast %64 : vector<8x1xf32> to vector<8x256xf32>
    %66 = arith.subf %28, %65 : vector<8x256xf32>
    %67 = vector.broadcast %64 : vector<8x1xf32> to vector<8x256xf32>
    %68 = arith.subf %57, %67 : vector<8x256xf32>
    %69 = arith.mulf %66, %66 : vector<8x256xf32>
    %cst_28 = arith.constant dense<0.000000e+00> : vector<8xf32>
    %70 = vector.multi_reduction <add>, %69, %cst_28 [1] : vector<8x256xf32> to vector<8xf32>
    %71 = vector.shape_cast %70 : vector<8xf32> to vector<8x1xf32>
    %72 = arith.mulf %68, %68 : vector<8x256xf32>
    %cst_29 = arith.constant dense<0.000000e+00> : vector<8xf32>
    %73 = vector.multi_reduction <add>, %72, %cst_29 [1] : vector<8x256xf32> to vector<8xf32>
    %74 = vector.shape_cast %73 : vector<8xf32> to vector<8x1xf32>
    %75 = arith.addf %71, %74 : vector<8x1xf32>
    %cst_30 = arith.constant 0.001953125 : f32
    %76 = vector.broadcast %cst_30 : f32 to vector<8x1xf32>
    %77 = arith.mulf %75, %76 : vector<8x1xf32>
    %c0_31 = arith.constant 0 : index
    %c0_32 = arith.constant 0 : index
    %c0_33 = arith.constant 0 : index
    %78 = vector.load %arg2[%c0_31, %c0_32, %c0_33] : memref<2x8x1xf32, #tpu.memory_space<vmem>>, vector<1x8x1xf32>
    %79 = vector.shape_cast %78 : vector<1x8x1xf32> to vector<8x1xf32>
    %cst_34 = arith.constant 9.99999974E-6 : f32
    %80 = vector.broadcast %cst_34 : f32 to vector<8x1xf32>
    %81 = arith.addf %77, %80 : vector<8x1xf32>
    %82 = math.rsqrt %81 : vector<8x1xf32>
    %83 = arith.mulf %79, %82 : vector<8x1xf32>
    %c1_35 = arith.constant 1 : index
    %c0_36 = arith.constant 0 : index
    %c0_37 = arith.constant 0 : index
    %84 = vector.load %arg2[%c1_35, %c0_36, %c0_37] : memref<2x8x1xf32, #tpu.memory_space<vmem>>, vector<1x8x1xf32>
    %85 = vector.shape_cast %84 : vector<1x8x1xf32> to vector<8x1xf32>
    %86 = tpu.iota {dimensions = array<i32: 1>} : vector<1x49xi32>
    %c7_i32 = arith.constant 7 : i32
    %87 = vector.broadcast %c7_i32 : i32 to vector<1x49xi32>
    %88 = arith.cmpi sge, %86, %87 : vector<1x49xi32>
    %89 = arith.extui %88 : vector<1x49xi1> to vector<1x49xi32>
    %c14_i32 = arith.constant 14 : i32
    %90 = vector.broadcast %c14_i32 : i32 to vector<1x49xi32>
    %91 = arith.cmpi sge, %86, %90 : vector<1x49xi32>
    %92 = arith.extui %91 : vector<1x49xi1> to vector<1x49xi32>
    %93 = arith.addi %89, %92 : vector<1x49xi32>
    %c21_i32 = arith.constant 21 : i32
    %94 = vector.broadcast %c21_i32 : i32 to vector<1x49xi32>
    %95 = arith.cmpi sge, %86, %94 : vector<1x49xi32>
    %96 = arith.extui %95 : vector<1x49xi1> to vector<1x49xi32>
    %97 = arith.addi %93, %96 : vector<1x49xi32>
    %c28_i32 = arith.constant 28 : i32
    %98 = vector.broadcast %c28_i32 : i32 to vector<1x49xi32>
    %99 = arith.cmpi sge, %86, %98 : vector<1x49xi32>
    %100 = arith.extui %99 : vector<1x49xi1> to vector<1x49xi32>
    %101 = arith.addi %97, %100 : vector<1x49xi32>
    %c35_i32 = arith.constant 35 : i32
    %102 = vector.broadcast %c35_i32 : i32 to vector<1x49xi32>
    %103 = arith.cmpi sge, %86, %102 : vector<1x49xi32>
    %104 = arith.extui %103 : vector<1x49xi1> to vector<1x49xi32>
    %105 = arith.addi %101, %104 : vector<1x49xi32>
    %c42_i32 = arith.constant 42 : i32
    %106 = vector.broadcast %c42_i32 : i32 to vector<1x49xi32>
    %107 = arith.cmpi sge, %86, %106 : vector<1x49xi32>
    %108 = arith.extui %107 : vector<1x49xi1> to vector<1x49xi32>
    %109 = arith.addi %105, %108 : vector<1x49xi32>
    %c7_i32_38 = arith.constant 7 : i32
    %110 = vector.broadcast %c7_i32_38 : i32 to vector<1x49xi32>
    %111 = arith.muli %110, %109 : vector<1x49xi32>
    %112 = arith.subi %86, %111 : vector<1x49xi32>
    %c4_i32 = arith.constant 4 : i32
    %113 = vector.broadcast %c4_i32 : i32 to vector<1x49xi32>
    %114 = arith.addi %109, %113 : vector<1x49xi32>
    %c16_i32 = arith.constant 16 : i32
    %115 = vector.broadcast %c16_i32 : i32 to vector<1x49xi32>
    %116 = arith.muli %114, %115 : vector<1x49xi32>
    %c4_i32_39 = arith.constant 4 : i32
    %117 = vector.broadcast %c4_i32_39 : i32 to vector<1x49xi32>
    %118 = arith.addi %112, %117 : vector<1x49xi32>
    %119 = arith.addi %116, %118 : vector<1x49xi32>
    %120 = tpu.iota {dimensions = array<i32: 0>} : vector<256x49xi32>
    %121 = vector.broadcast %119 : vector<1x49xi32> to vector<256x49xi32>
    %122 = arith.cmpi eq, %120, %121 : vector<256x49xi32>
    %123 = arith.extui %122 : vector<256x49xi1> to vector<256x49xi32>
    %124 = arith.sitofp %123 : vector<256x49xi32> to vector<256x49xf32>
    %cst_40 = arith.constant dense<0.000000e+00> : vector<8x49xf32>
    %125 = tpu.matmul %66, %124, %cst_40 {dimension_numbers = #tpu.dot_dimension_numbers<[1], [0], [0], [1], [0, 0, 1, 1], [], []>} : vector<8x256xf32>, vector<256x49xf32>, vector<8x49xf32> -> vector<8x49xf32>
    %126 = vector.broadcast %83 : vector<8x1xf32> to vector<8x49xf32>
    %127 = arith.mulf %125, %126 : vector<8x49xf32>
    %128 = vector.broadcast %85 : vector<8x1xf32> to vector<8x49xf32>
    %129 = arith.addf %127, %128 : vector<8x49xf32>
    %c0_41 = arith.constant 0 : index
    %c0_42 = arith.constant 0 : index
    %c0_43 = arith.constant 0 : index
    %130 = vector.load %arg3[%c0_41, %c0_42, %c0_43] : memref<2x8x49xf32, #tpu.memory_space<vmem>>, vector<1x8x49xf32>
    %131 = vector.shape_cast %130 : vector<1x8x49xf32> to vector<8x49xf32>
    %132 = vector.shape_cast %129 : vector<8x49xf32> to vector<1x8x49xf32>
    tpu.vector_store %arg3[%c0_41, %c0_42, %c0_43], %132 {strides = array<i32>} : memref<2x8x49xf32, #tpu.memory_space<vmem>>, vector<1x8x49xf32>,
    %cst_44 = arith.constant dense<0.000000e+00> : vector<8x49xf32>
    %133 = tpu.matmul %68, %124, %cst_44 {dimension_numbers = #tpu.dot_dimension_numbers<[1], [0], [0], [1], [0, 0, 1, 1], [], []>} : vector<8x256xf32>, vector<256x49xf32>, vector<8x49xf32> -> vector<8x49xf32>
    %134 = vector.broadcast %83 : vector<8x1xf32> to vector<8x49xf32>
    %135 = arith.mulf %133, %134 : vector<8x49xf32>
    %136 = vector.broadcast %85 : vector<8x1xf32> to vector<8x49xf32>
    %137 = arith.addf %135, %136 : vector<8x49xf32>
    %c1_45 = arith.constant 1 : index
    %c0_46 = arith.constant 0 : index
    %c0_47 = arith.constant 0 : index
    %138 = vector.load %arg3[%c1_45, %c0_46, %c0_47] : memref<2x8x49xf32, #tpu.memory_space<vmem>>, vector<1x8x49xf32>
    %139 = vector.shape_cast %138 : vector<1x8x49xf32> to vector<8x49xf32>
    %140 = vector.shape_cast %137 : vector<8x49xf32> to vector<1x8x49xf32>
    tpu.vector_store %arg3[%c1_45, %c0_46, %c0_47], %140 {strides = array<i32>} : memref<2x8x49xf32, #tpu.memory_space<vmem>>, vector<1x8x49xf32>,
    return
  }
}

</mosaic_0001>

<llo_original>
// kernel: tpu_custom_call.1
$region0: #{tpu_custom_call.1}
  #allocation0 [shape = 'u32[]', space=smem, size = 0x4, offset = 0x4, fixed_abs, tag = 'smem constant byte address 0x4 - core index']
  #allocation1 [shape = 'u32[72,128]{1,0:T(1,128)}', space=vmem, size = 0x9000, scoped, tag = 'internal scratch']
  %s0 = inlined_call_operand.vmem [shape: f32[2,4,256], index: 0, kind: input, shape index: {}]
  %s1 = inlined_call_operand.vmem [shape: f32[4,8,1], index: 1, kind: input, shape index: {}]
  %s2 = inlined_call_operand.vmem [shape: f32[2,8,1], index: 2, kind: input, shape index: {}]
  %s3 = inlined_call_operand.hbm [shape: f32[2,8,49], index: 3, kind: output, shape index: {}]
  %s4 = sld [smem:[#allocation0]]
  $region22: #{tpu_custom_call.1} parent=0
    _
  %s6 = ssub.s32 1, %s4
  %s7 = scalar_select 0, %s6, %s4
  $region1: #{tpu_custom_call.1} parent=0
    #allocation2 [shape = 'u8[8192]{0}', space=vmem, size = 0x2000, scoped, tag = 'output window, operand 0, single buffered']
    #allocation3 [shape = 's32[1]{0}', space=sflag, size = 0x4, scoped, tag = 'scoped memory for tpu_custom_call.1']
    %8 = vsyncpa [#allocation3], 0
    // Predicated region
    $region2: #{tpu_custom_call.1} parent=1 // pred_check
      _
    $region3: #{tpu_custom_call.1} parent=1 // pred_check_branch
      %10 = sbr.rel (0) target = $region5
    $region4: #{tpu_custom_call.1} parent=1 // pred_region
      _
    $region5: #{tpu_custom_call.1} parent=1 // pred_fallthru
      _
    // Predicated region
    $region6: #{tpu_custom_call.1} parent=1 // pred_check
      _
    $region7: #{tpu_custom_call.1} parent=1 // pred_check_branch
      %12 = sbr.rel (0) target = $region9
    $region8: #{tpu_custom_call.1} parent=1 // pred_region
      _
    $region9: #{tpu_custom_call.1} parent=1 // pred_fallthru
      _
    // Predicated region
    $region10: #{tpu_custom_call.1} parent=1 // pred_check
      _
    $region11: #{tpu_custom_call.1} parent=1 // pred_check_branch
      %14 = sbr.rel (0) target = $region13
    $region12: #{tpu_custom_call.1} parent=1 // pred_region
      _
    $region13: #{tpu_custom_call.1} parent=1 // pred_fallthru
      _
    %v15 = vld [vmem:[%s0] sm:$0xff]
    %v16 = vld [vmem:[%s1] sm:$0xff]
    %18 = vset.pattern.permute.xlu0 0
    %19 = vperm.xlu0 %18, %v16
    %v20 = vpop.permute.xlu0 %19
    %v23 = vperm.slane %v15, 0
    %v24 = vperm.slane %v15, 4
    %v27 = vperm.slane %v23, 0
    %v28 = vperm.slane %v24, 0
    %v29 = vmul.f32 %v20, %v27
    %v30 = vmul.f32 %v20, %v28
    %s31 = scalar_lea.vmem %s1, 8
    %v32 = vld [vmem:[%s31] sm:$0xff]
    %34 = vset.pattern.permute.xlu0 0
    %35 = vperm.xlu0 %34, %v32
    %v36 = vpop.permute.xlu0 %35
    %v38 = vperm.slane %v15, 1
    %v39 = vperm.slane %v15, 5
    %v42 = vperm.slane %v38, 1
    %v43 = vperm.slane %v39, 1
    %v44 = vmul.f32 %v36, %v42
    %v45 = vmul.f32 %v36, %v43
    %v46 = vadd.f32 %v29, %v44
    %v47 = vadd.f32 %v30, %v45
    %s48 = scalar_lea.vmem %s1, 16
    %v49 = vld [vmem:[%s48] sm:$0xff]
    %51 = vset.pattern.permute.xlu0 0
    %52 = vperm.xlu0 %51, %v49
    %v53 = vpop.permute.xlu0 %52
    %v55 = vperm.slane %v15, 2
    %v56 = vperm.slane %v15, 6
    %v59 = vperm.slane %v55, 2
    %v60 = vperm.slane %v56, 2
    %v61 = vmul.f32 %v53, %v59
    %v62 = vmul.f32 %v53, %v60
    %v63 = vadd.f32 %v46, %v61
    %v64 = vadd.f32 %v47, %v62
    %s65 = scalar_lea.vmem %s1, 24
    %v66 = vld [vmem:[%s65] sm:$0xff]
    %68 = vset.pattern.permute.xlu0 0
    %69 = vperm.xlu0 %68, %v66
    %v70 = vpop.permute.xlu0 %69
    %v72 = vperm.slane %v15, 3
    %v73 = vperm.slane %v15, 7
    %v76 = vperm.slane %v72, 3
    %v77 = vperm.slane %v73, 3
    %v78 = vmul.f32 %v70, %v76
    %v79 = vmul.f32 %v70, %v77
    %v80 = vadd.f32 %v63, %v78
    %v81 = vadd.f32 %v64, %v79
    %s82 = scalar_lea.vmem %s0, 8
    %v83 = vld [vmem:[%s82] sm:$0xff]
    %v85 = vperm.slane %v83, 0
    %v86 = vperm.slane %v83, 4
    %v89 = vperm.slane %v85, 0
    %v90 = vperm.slane %v86, 0
    %v91 = vmul.f32 %v20, %v89
    %v92 = vmul.f32 %v20, %v90
    %v93 = vperm.slane %v83, 1
    %v94 = vperm.slane %v83, 5
    %v97 = vperm.slane %v93, 1
    %v98 = vperm.slane %v94, 1
    %v99 = vmul.f32 %v36, %v97
    %v100 = vmul.f32 %v36, %v98
    %v101 = vadd.f32 %v91, %v99
    %v102 = vadd.f32 %v92, %v100
    %v103 = vperm.slane %v83, 2
    %v104 = vperm.slane %v83, 6
    %v107 = vperm.slane %v103, 2
    %v108 = vperm.slane %v104, 2
    %v109 = vmul.f32 %v53, %v107
    %v110 = vmul.f32 %v53, %v108
    %v111 = vadd.f32 %v101, %v109
    %v112 = vadd.f32 %v102, %v110
    %v113 = vperm.slane %v83, 3
    %v114 = vperm.slane %v83, 7
    %v117 = vperm.slane %v113, 3
    %v118 = vperm.slane %v114, 3
    %v119 = vmul.f32 %v70, %v117
    %v120 = vmul.f32 %v70, %v118
    %v121 = vadd.f32 %v111, %v119
    %v122 = vadd.f32 %v112, %v120
    %v123 = vadd.f32 %v80, %v81
    %124 = vadd.xlane.f32.xlu0 %v123
    %v125 = vpop.xlane.xlu0 %124
    %v126 = vadd.f32 %v121, %v122
    %127 = vadd.xlane.f32.xlu0 %v126
    %v128 = vpop.xlane.xlu0 %127
    %v129 = vadd.f32 %v125, %v128
    %v130 = vmul.f32 %v129, 0.001953125
    %v131 = vsub.f32 %v80, %v130
    %v132 = vsub.f32 %v81, %v130
    %v133 = vsub.f32 %v121, %v130
    %v134 = vsub.f32 %v122, %v130
    %v135 = vmul.f32 %v131, %v131
    %v136 = vmul.f32 %v132, %v132
    %v137 = vadd.f32 %v135, %v136
    %138 = vadd.xlane.f32.xlu0 %v137
    %v139 = vpop.xlane.xlu0 %138
    %v140 = vmul.f32 %v133, %v133
    %v141 = vmul.f32 %v134, %v134
    %v142 = vadd.f32 %v140, %v141
    %143 = vadd.xlane.f32.xlu0 %v142
    %v144 = vpop.xlane.xlu0 %143
    %v145 = vadd.f32 %v139, %v144
    %v146 = vmul.f32 %v145, 0.001953125
    %v147 = vld [vmem:[%s2] sm:$0xff]
    %v148 = vadd.f32 %v146, 1e-05
    %v149 = vrsqrt.pop %v148
    %v150 = vmul.f32 %v149, %v148
    %v151 = vmul.f32 %v150, %v149
    %v152 = vmul.f32 0.5, %v151
    %v153 = vsub.f32 1.5, %v152
    %v154 = vmul.f32 %v149, %v153
    %vm155 = vweird.f32 %v148
    %vm156 = vweird.f32 %v149
    %vm157 = vmor %vm155, %vm156
    %v158 = vsel %vm157, %v149, %v154
    %v159 = vmul.f32 %v147, %v158
    %s160 = scalar_lea.vmem %s2, 8
    %v161 = vld [vmem:[%s160] sm:$0xff]
    %v162 = vlaneseq
    %v163 = vand.u32 %v162, 127
    %vm164 = vcmp.ge.s32.totalorder %v163, 7
    %v165 = vsel %vm164, 1, 0
    %vm166 = vcmp.ge.s32.totalorder %v163, 14
    %v167 = vsel %vm166, 1, 0
    %v168 = vadd.s32 %v165, %v167
    %vm169 = vcmp.ge.s32.totalorder %v163, 21
    %v170 = vsel %vm169, 1, 0
    %v171 = vadd.s32 %v168, %v170
    %vm172 = vcmp.ge.s32.totalorder %v163, 28
    %v173 = vsel %vm172, 1, 0
    %v174 = vadd.s32 %v171, %v173
    %vm175 = vcmp.ge.s32.totalorder %v163, 35
    %v176 = vsel %vm175, 1, 0
    %v177 = vadd.s32 %v174, %v176
    %vm178 = vcmp.ge.s32.totalorder %v163, 42
    %v179 = vsel %vm178, 1, 0
    %v180 = vadd.s32 %v177, %v179
    %v181 = vmul.u32 %v180, 7
    %v182 = vsub.s32 %v163, %v181
    %v183 = vadd.s32 %v180, 4
    %v184 = vmul.u32 %v183, 16
    %v185 = vadd.s32 %v182, 4
    %v186 = vadd.s32 %v184, %v185
    %v187 = vlaneseq
    %v188 = vshrl.u32 %v187, 7
    %v189 = vadd.s32 %v188, 8
    %v190 = vadd.s32 %v188, 16
    %v191 = vadd.s32 %v188, 24
    %v192 = vadd.s32 %v188, 32
    %v193 = vadd.s32 %v188, 40
    %v194 = vadd.s32 %v188, 48
    %v195 = vadd.s32 %v188, 56
    %v196 = vadd.s32 %v188, 64
    %v197 = vadd.s32 %v188, 72
    %v198 = vadd.s32 %v188, 80
    %v199 = vadd.s32 %v188, 88
    %v200 = vadd.s32 %v188, 96
    %v201 = vadd.s32 %v188, 104
    %v202 = vadd.s32 %v188, 112
    %v203 = vadd.s32 %v188, 120
    %v204 = vadd.s32 %v188, 128
    %v205 = vadd.s32 %v188, 136
    %v206 = vadd.s32 %v188, 144
    %v207 = vadd.s32 %v188, 152
    %v208 = vadd.s32 %v188, 160
    %v209 = vadd.s32 %v188, 168
    %v210 = vadd.s32 %v188, 176
    %v211 = vadd.s32 %v188, 184
    %v212 = vadd.s32 %v188, 192
    %v213 = vadd.s32 %v188, 200
    %v214 = vadd.s32 %v188, 208
    %v215 = vadd.s32 %v188, 216
    %v216 = vadd.s32 %v188, 224
    %v217 = vadd.s32 %v188, 232
    %v218 = vadd.s32 %v188, 240
    %v219 = vadd.s32 %v188, 248
    %vm220 = vcmp.eq.s32.totalorder %v188, %v186
    %vm221 = vcmp.eq.s32.totalorder %v189, %v186
    %vm222 = vcmp.eq.s32.totalorder %v190, %v186
    %vm223 = vcmp.eq.s32.totalorder %v191, %v186
    %vm224 = vcmp.eq.s32.totalorder %v192, %v186
    %vm225 = vcmp.eq.s32.totalorder %v193, %v186
    %vm226 = vcmp.eq.s32.totalorder %v194, %v186
    %vm227 = vcmp.eq.s32.totalorder %v195, %v186
    %vm228 = vcmp.eq.s32.totalorder %v196, %v186
    %vm229 = vcmp.eq.s32.totalorder %v197, %v186
    %vm230 = vcmp.eq.s32.totalorder %v198, %v186
    %vm231 = vcmp.eq.s32.totalorder %v199, %v186
    %vm232 = vcmp.eq.s32.totalorder %v200, %v186
    %vm233 = vcmp.eq.s32.totalorder %v201, %v186
    %vm234 = vcmp.eq.s32.totalorder %v202, %v186
    %vm235 = vcmp.eq.s32.totalorder %v203, %v186
    %vm236 = vcmp.eq.s32.totalorder %v204, %v186
    %vm237 = vcmp.eq.s32.totalorder %v205, %v186
    %vm238 = vcmp.eq.s32.totalorder %v206, %v186
    %vm239 = vcmp.eq.s32.totalorder %v207, %v186
    %vm240 = vcmp.eq.s32.totalorder %v208, %v186
    %vm241 = vcmp.eq.s32.totalorder %v209, %v186
    %vm242 = vcmp.eq.s32.totalorder %v210, %v186
    %vm243 = vcmp.eq.s32.totalorder %v211, %v186
    %vm244 = vcmp.eq.s32.totalorder %v212, %v186
    %vm245 = vcmp.eq.s32.totalorder %v213, %v186
    %vm246 = vcmp.eq.s32.totalorder %v214, %v186
    %vm247 = vcmp.eq.s32.totalorder %v215, %v186
    %vm248 = vcmp.eq.s32.totalorder %v216, %v186
    %vm249 = vcmp.eq.s32.totalorder %v217, %v186
    %vm250 = vcmp.eq.s32.totalorder %v218, %v186
    %vm251 = vcmp.eq.s32.totalorder %v219, %v186
    %v252 = vsel %vm220, 1, 0
    %v253 = vsel %vm221, 1, 0
    %v254 = vsel %vm222, 1, 0
    %v255 = vsel %vm223, 1, 0
    %v256 = vsel %vm224, 1, 0
    %v257 = vsel %vm225, 1, 0
    %v258 = vsel %vm226, 1, 0
    %v259 = vsel %vm227, 1, 0
    %v260 = vsel %vm228, 1, 0
    %v261 = vsel %vm229, 1, 0
    %v262 = vsel %vm230, 1, 0
    %v263 = vsel %vm231, 1, 0
    %v264 = vsel %vm232, 1, 0
    %v265 = vsel %vm233, 1, 0
    %v266 = vsel %vm234, 1, 0
    %v267 = vsel %vm235, 1, 0
    %v268 = vsel %vm236, 1, 0
    %v269 = vsel %vm237, 1, 0
    %v270 = vsel %vm238, 1, 0
    %v271 = vsel %vm239, 1, 0
    %v272 = vsel %vm240, 1, 0
    %v273 = vsel %vm241, 1, 0
    %v274 = vsel %vm242, 1, 0
    %v275 = vsel %vm243, 1, 0
    %v276 = vsel %vm244, 1, 0
    %v277 = vsel %vm245, 1, 0
    %v278 = vsel %vm246, 1, 0
    %v279 = vsel %vm247, 1, 0
    %v280 = vsel %vm248, 1, 0
    %v281 = vsel %vm249, 1, 0
    %v282 = vsel %vm250, 1, 0
    %v283 = vsel %vm251, 1, 0
    %v284 = vcvt.s32.f32 %v252
    %v285 = vcvt.s32.f32 %v253
    %v286 = vcvt.s32.f32 %v254
    %v287 = vcvt.s32.f32 %v255
    %v288 = vcvt.s32.f32 %v256
    %v289 = vcvt.s32.f32 %v257
    %v290 = vcvt.s32.f32 %v258
    %v291 = vcvt.s32.f32 %v259
    %v292 = vcvt.s32.f32 %v260
    %v293 = vcvt.s32.f32 %v261
    %v294 = vcvt.s32.f32 %v262
    %v295 = vcvt.s32.f32 %v263
    %v296 = vcvt.s32.f32 %v264
    %v297 = vcvt.s32.f32 %v265
    %v298 = vcvt.s32.f32 %v266
    %v299 = vcvt.s32.f32 %v267
    %v300 = vcvt.s32.f32 %v268
    %v301 = vcvt.s32.f32 %v269
    %v302 = vcvt.s32.f32 %v270
    %v303 = vcvt.s32.f32 %v271
    %v304 = vcvt.s32.f32 %v272
    %v305 = vcvt.s32.f32 %v273
    %v306 = vcvt.s32.f32 %v274
    %v307 = vcvt.s32.f32 %v275
    %v308 = vcvt.s32.f32 %v276
    %v309 = vcvt.s32.f32 %v277
    %v310 = vcvt.s32.f32 %v278
    %v311 = vcvt.s32.f32 %v279
    %v312 = vcvt.s32.f32 %v280
    %v313 = vcvt.s32.f32 %v281
    %v314 = vcvt.s32.f32 %v282
    %v315 = vcvt.s32.f32 %v283
    %316 = vmatpush.msra.mxu0 %v299
    %317 = vmatpush.msra.mxu0 %v298
    %318 = vmatpush.msra.mxu0 %v297
    %319 = vmatpush.msra.mxu0 %v296
    %320 = vmatpush.msra.mxu0 %v295
    %321 = vmatpush.msra.mxu0 %v294
    %322 = vmatpush.msra.mxu0 %v293
    %323 = vmatpush.msra.mxu0 %v292
    %324 = vmatpush.msra.mxu0 %v291
    %325 = vmatpush.msra.mxu0 %v290
    %326 = vmatpush.msra.mxu0 %v289
    %327 = vmatpush.msra.mxu0 %v288
    %328 = vmatpush.msra.mxu0 %v287
    %329 = vmatpush.msra.mxu0 %v286
    %330 = vmatpush.msra.mxu0 %v285
    %331 = vmatpush.msra.mxu0 %v284
    %332 = vmatmul.f32.gmra.mxu0 %v131
    %v333 = vpop.f32.mrf.mxu0
    %v334 = vadd.f32 0.0, %v333
    %335 = vdwg.mxu0
    %336 = vmatpush.msra.mxu0 %v315
    %337 = vmatpush.msra.mxu0 %v314
    %338 = vmatpush.msra.mxu0 %v313
    %339 = vmatpush.msra.mxu0 %v312
    %340 = vmatpush.msra.mxu0 %v311
    %341 = vmatpush.msra.mxu0 %v310
    %342 = vmatpush.msra.mxu0 %v309
    %343 = vmatpush.msra.mxu0 %v308
    %344 = vmatpush.msra.mxu0 %v307
    %345 = vmatpush.msra.mxu0 %v306
    %346 = vmatpush.msra.mxu0 %v305
    %347 = vmatpush.msra.mxu0 %v304
    %348 = vmatpush.msra.mxu0 %v303
    %349 = vmatpush.msra.mxu0 %v302
    %350 = vmatpush.msra.mxu0 %v301
    %351 = vmatpush.msra.mxu0 %v300
    %352 = vmatmul.f32.gmra.mxu0 %v132
    %v353 = vpop.f32.mrf.mxu0
    %v354 = vadd.f32 %v334, %v353
    %355 = vdwg.mxu0
    %357 = vset.pattern.permute.xlu0 0
    %358 = vperm.xlu0 %357, %v159
    %v359 = vpop.permute.xlu0 %358
    %v361 = vmul.f32 %v354, %v359
    %363 = vset.pattern.permute.xlu0 0
    %364 = vperm.xlu0 %363, %v161
    %v365 = vpop.permute.xlu0 %364
    %v367 = vadd.f32 %v361, %v365
    %vm368 = vcmask 400384
    %369 = vst.msk [vmem:[#allocation2] sm:$0xff] %vm368, %v367
    %370 = vmatpush.msra.mxu0 %v299
    %371 = vmatpush.msra.mxu0 %v298
    %372 = vmatpush.msra.mxu0 %v297
    %373 = vmatpush.msra.mxu0 %v296
    %374 = vmatpush.msra.mxu0 %v295
    %375 = vmatpush.msra.mxu0 %v294
    %376 = vmatpush.msra.mxu0 %v293
    %377 = vmatpush.msra.mxu0 %v292
    %378 = vmatpush.msra.mxu0 %v291
    %379 = vmatpush.msra.mxu0 %v290
    %380 = vmatpush.msra.mxu0 %v289
    %381 = vmatpush.msra.mxu0 %v288
    %382 = vmatpush.msra.mxu0 %v287
    %383 = vmatpush.msra.mxu0 %v286
    %384 = vmatpush.msra.mxu0 %v285
    %385 = vmatpush.msra.mxu0 %v284
    %386 = vmatmul.f32.gmra.mxu0 %v133
    %v387 = vpop.f32.mrf.mxu0
    %v388 = vadd.f32 0.0, %v387
    %389 = vdwg.mxu0
    %390 = vmatpush.msra.mxu0 %v315
    %391 = vmatpush.msra.mxu0 %v314
    %392 = vmatpush.msra.mxu0 %v313
    %393 = vmatpush.msra.mxu0 %v312
    %394 = vmatpush.msra.mxu0 %v311
    %395 = vmatpush.msra.mxu0 %v310
    %396 = vmatpush.msra.mxu0 %v309
    %397 = vmatpush.msra.mxu0 %v308
    %398 = vmatpush.msra.mxu0 %v307
    %399 = vmatpush.msra.mxu0 %v306
    %400 = vmatpush.msra.mxu0 %v305
    %401 = vmatpush.msra.mxu0 %v304
    %402 = vmatpush.msra.mxu0 %v303
    %403 = vmatpush.msra.mxu0 %v302
    %404 = vmatpush.msra.mxu0 %v301
    %405 = vmatpush.msra.mxu0 %v300
    %406 = vmatmul.f32.gmra.mxu0 %v134
    %v407 = vpop.f32.mrf.mxu0
    %v408 = vadd.f32 %v388, %v407
    %409 = vdwg.mxu0
    %v410 = vmul.f32 %v408, %v359
    %v411 = vadd.f32 %v410, %v365
    %s412 = scalar_lea.vmem [#allocation2], 8
    %413 = vst.msk [vmem:[%s412] sm:$0xff] %vm368, %v411
    // Predicated region
    $region14: #{tpu_custom_call.1} parent=1 // pred_check
      _
    $region15: #{tpu_custom_call.1} parent=1 // pred_check_branch
      %415 = sbr.rel (0) target = $region17
    $region16: #{tpu_custom_call.1} parent=1 // pred_region
      %417 = vsyncadd [#allocation3], 0
      %s418 = sshll.u32 [#allocation2], 4
      %s419 = int_to_ptr.vmem [resolvable:$true] %s418
      %s420 = sshll.u32 %s3, 4
      %s421 = int_to_ptr.hbm [resolvable:$true] %s420
      %426 = dma.vmem_to_hbm [thread:$0]  %s419, 256, %s421, [#allocation3], 128, 128, 8
    $region17: #{tpu_custom_call.1} parent=1 // pred_fallthru
      _
    // Predicated region
    $region18: #{tpu_custom_call.1} parent=1 // pred_check
      _
    $region19: #{tpu_custom_call.1} parent=1 // pred_check_branch
      %428 = sbr.rel (0) target = $region21
    $region20: #{tpu_custom_call.1} parent=1 // pred_region
      %430 = dma.done [#allocation3], 256
    $region21: #{tpu_custom_call.1} parent=1 // pred_fallthru
      _
    %431 = vsyncpa [#allocation3], 1

</llo_original>
